<compile_context>
chip_gen: v5e
topology: v5e:2x2
jax: 0.10.0
libtpu: 0.0.40
codegen_flags: <defaults>
</compile_context>

<pallas_src>
import functools

import jax
import jax.numpy as jnp
from jax import lax
from jax.experimental import pallas as pl
from jax.experimental.pallas import tpu as pltpu


def _round_up(x, m):
    return (x + m - 1) // m * m


def lstm_recurrence_kernel(len_ref, pg_ref, whh_ref, out_ref, h_sc, c_sc, *,
                           tt, hp):
    """One grid step == TT folded LSTM timesteps.

    len_ref: (Bp, 1)  int32 sequence lengths (padded rows = 0)
    pg_ref:  (TT, Bp, 4*Hp) pre-gates for this time slab (= x@W_ih + b)
    whh_ref: (Hp, 4*Hp) recurrent weights, gate-padded to 128-lane boundaries
    out_ref: (Bp, Hp) final hidden state (written at last grid step)
    h_sc/c_sc: (Bp, Hp) recurrent state carried across grid iterations
    """
    s = pl.program_id(0)

    @pl.when(s == 0)
    def _():
        h_sc[...] = jnp.zeros_like(h_sc)
        c_sc[...] = jnp.zeros_like(c_sc)

    lengths = len_ref[...]          # (Bp, 1) int32
    whh = whh_ref[...]              # hoisted: loaded once per grid step
    # NOTE: for production sizes on v6e/v7x, cast `h`/`whh` to bf16 here
    # (keeping preferred_element_type=f32) to double MXU throughput.

    def step(i, carry):
        h, c = carry
        t_global = s * tt + i                      # absolute timestep
        gates = pg_ref[i] + jnp.dot(h, whh,
                                    preferred_element_type=jnp.float32)
        # Gate slices fall on 128-lane boundaries (Hp is a multiple of 128).
        i_g = jax.nn.sigmoid(gates[:, 0 * hp:1 * hp])
        f_g = jax.nn.sigmoid(gates[:, 1 * hp:2 * hp])
        g_g = jnp.tanh(gates[:, 2 * hp:3 * hp])
        o_g = jax.nn.sigmoid(gates[:, 3 * hp:4 * hp])
        c_new = f_g * c + i_g * g_g
        h_new = o_g * jnp.tanh(c_new)
        # pack_padded_sequence semantics: freeze state once t >= length[b].
        active = t_global < lengths                # (Bp, 1) bool
        return (jnp.where(active, h_new, h), jnp.where(active, c_new, c))

    h, c = lax.fori_loop(0, tt, step, (h_sc[...], c_sc[...]), unroll=True)
    h_sc[...] = h
    c_sc[...] = c

    @pl.when(s == pl.num_programs(0) - 1)
    def _():
        out_ref[...] = h.astype(out_ref.dtype)


def lstm_forward(ids, lengths, params, *, tt=8):
    """Embedding + hoisted input GEMM (XLA) -> Pallas recurrence -> classifier."""
    emb_table = params["embedding"]        # (V, E)
    wih, whh, b = params["wih"], params["whh"], params["b"]
    wout, bout = params["wout"], params["bout"]

    B, T = ids.shape
    E = emb_table.shape[1]
    H = whh.shape[0]

    # Padded sizes: batch to sublane multiple, hidden per-gate to 128 lanes.
    Bp = _round_up(max(B, 8), 8)
    Hp = _round_up(max(H, 128), 128)
    G = 4 * Hp
    Tt = min(tt, T) if T > 0 else 1
    Tp = _round_up(T, Tt)

    def pad_gates(w, rows_to):
        """(rows, 4H) -> (rows_to, 4Hp) with gate k placed at [k*Hp, k*Hp+H)."""
        rows = w.shape[0]
        out = jnp.zeros((rows_to, G), w.dtype)
        for k in range(4):
            out = out.at[:rows, k * Hp:k * Hp + H].set(w[:, k * H:(k + 1) * H])
        return out

    wih_p = pad_gates(wih, E)       # (E, 4Hp)
    whh_p = pad_gates(whh, Hp)      # (Hp, 4Hp)  (padded rows/cols are zero)
    b_p = pad_gates(b, 1)           # (1, 4Hp)

    # Hoisted, time-independent input projection as one well-shaped GEMM.
    embeds = jnp.take(emb_table, ids, axis=0)                 # (B, T, E)
    pre = jnp.einsum("bte,eg->btg", embeds, wih_p) + b_p      # (B, T, 4Hp)
    pre = jnp.pad(pre, ((0, Bp - B), (0, Tp - T), (0, 0)))
    pre_tm = jnp.transpose(pre, (1, 0, 2))                    # (Tp, Bp, 4Hp)

    lengths_p = jnp.zeros((Bp, 1), jnp.int32).at[:B, 0].set(
        lengths.astype(jnp.int32))

    grid_spec = pltpu.PrefetchScalarGridSpec(
        num_scalar_prefetch=0,
        grid=(Tp // Tt,),
        in_specs=[
            pl.BlockSpec((Bp, 1), lambda s: (0, 0)),        # lengths (resident)
            pl.BlockSpec((Tt, Bp, G), lambda s: (s, 0, 0)),  # pre-gates slab
            pl.BlockSpec((Hp, G), lambda s: (0, 0)),         # W_hh (resident)
        ],
        out_specs=pl.BlockSpec((Bp, Hp), lambda s: (0, 0)),
        scratch_shapes=[
            pltpu.VMEM((Bp, Hp), jnp.float32),   # h
            pltpu.VMEM((Bp, Hp), jnp.float32),   # c
        ],
    )

    h_final = pl.pallas_call(
        functools.partial(lstm_recurrence_kernel, tt=Tt, hp=Hp),
        out_shape=jax.ShapeDtypeStruct((Bp, Hp), jnp.float32),
        grid_spec=grid_spec,
        compiler_params=pltpu.CompilerParams(
            dimension_semantics=("arbitrary",)),   # sequential recurrence
    )(lengths_p, pre_tm, whh_p)

    # Tiny classifier + log_softmax in XLA (avoids a 4-lane masked-store out).
    h_final = h_final[:B, :H]
    logits = h_final @ wout + bout
    return jax.nn.log_softmax(logits, axis=-1)


def ref_forward(ids, lengths, params):
    """Pure-JAX reference mirroring the PyTorch module's semantics."""
    emb = jnp.take(params["embedding"], ids, axis=0)   # (B, T, E)
    B, T, _ = emb.shape
    H = params["whh"].shape[0]
    h = jnp.zeros((B, H), jnp.float32)
    c = jnp.zeros((B, H), jnp.float32)
    for t in range(T):
        x_t = emb[:, t]
        gates = x_t @ params["wih"] + h @ params["whh"] + params["b"]
        i_g = jax.nn.sigmoid(gates[:, :H])
        f_g = jax.nn.sigmoid(gates[:, H:2 * H])
        g_g = jnp.tanh(gates[:, 2 * H:3 * H])
        o_g = jax.nn.sigmoid(gates[:, 3 * H:])
        c_new = f_g * c + i_g * g_g
        h_new = o_g * jnp.tanh(c_new)
        m = (t < lengths).astype(jnp.float32)[:, None]
        h = m * h_new + (1.0 - m) * h
        c = m * c_new + (1.0 - m) * c
    logits = h @ params["wout"] + params["bout"]
    return jax.nn.log_softmax(logits, axis=-1)


def make_params(key, vocab_size, embedding_dim, hidden_dim, num_class):
    ks = jax.random.split(key, 7)
    scale = 0.1
    # PyTorch LSTM weights are (4H, E)/(4H, H); store pre-transposed.
    return {
        "embedding": scale * jax.random.normal(ks[0], (vocab_size, embedding_dim), jnp.float32),
        "wih": scale * jax.random.normal(ks[1], (embedding_dim, 4 * hidden_dim), jnp.float32),
        "whh": scale * jax.random.normal(ks[2], (hidden_dim, 4 * hidden_dim), jnp.float32),
        # b = b_ih + b_hh, kept 2D (1, 4H).
        "b": (scale * jax.random.normal(ks[3], (1, 4 * hidden_dim), jnp.float32)
              + scale * jax.random.normal(ks[4], (1, 4 * hidden_dim), jnp.float32)),
        "wout": scale * jax.random.normal(ks[5], (hidden_dim, num_class), jnp.float32),
        "bout": scale * jax.random.normal(ks[6], (1, num_class), jnp.float32),
    }


if __name__ == "__main__":
    VOCAB, EMB, HID, NCLS = 50, 16, 32, 4
    B, T = 2, 8

    key = jax.random.PRNGKey(0)
    k_param, k_ids = jax.random.split(key)
    params = make_params(k_param, VOCAB, EMB, HID, NCLS)

    ids = jax.random.randint(k_ids, (B, T), 0, VOCAB, dtype=jnp.int32)
    lengths = jnp.array([8, 5], dtype=jnp.int32)   # variable-length sequences

    # tt=4 -> grid=(2,): exercises both timestep folding and the cross-grid
    # h/c scratch carry.
    out = lstm_forward(ids, lengths, params, tt=4)
    out = jax.block_until_ready(out)

    ref = ref_forward(ids, lengths, params)
    assert out.shape == (B, NCLS)
    assert jnp.allclose(out, ref, atol=1e-4, rtol=1e-4), (out, ref)

    print("KERNEL_OK")
</pallas_src>

<mosaic_0001>
module attributes {stable_mosaic.version = 11 : i64} {
  func.func @lstm_recurrence_kernel(%arg0: i32, %arg1: memref<8x1xi32, #tpu.memory_space<vmem>>, %arg2: memref<4x8x512xf32, #tpu.memory_space<vmem>>, %arg3: memref<128x512xf32, #tpu.memory_space<vmem>>, %arg4: memref<8x128xf32, #tpu.memory_space<vmem>>, %arg5: memref<8x128xf32, #tpu.memory_space<vmem>>, %arg6: memref<8x128xf32, #tpu.memory_space<vmem>>) attributes {dimension_semantics = [#tpu.dimension_semantics<arbitrary>], iteration_bounds = array<i64: 2>, scalar_prefetch = 0 : i64, scratch_operands = 2 : i64, tpu.core_type = #tpu.core_type<tc>, window_params = [{pipeline_mode = #tpu.pipeline_mode<synchronous>, transform_indices = @transform_0, window_bounds = array<i64: 8, 1>}, {transform_indices = @transform_1, window_bounds = array<i64: 4, 8, 512>}, {pipeline_mode = #tpu.pipeline_mode<synchronous>, transform_indices = @transform_2, window_bounds = array<i64: 128, 512>}, {pipeline_mode = #tpu.pipeline_mode<synchronous>, transform_indices = @transform_3, window_bounds = array<i64: 8, 128>}]} {
    %c0_i32 = arith.constant 0 : i32
    %0 = arith.cmpi eq, %arg0, %c0_i32 : i32
    %1 = arith.extui %0 : i1 to i32
    %c0_i32_0 = arith.constant 0 : i32
    %2 = arith.cmpi ne, %1, %c0_i32_0 : i32
    scf.if %2 {
      %cst_42 = arith.constant 0.000000e+00 : f32
      %172 = vector.broadcast %cst_42 : f32 to vector<8x128xf32>
      %c0_43 = arith.constant 0 : index
      %c0_44 = arith.constant 0 : index
      %173 = vector.load %arg5[%c0_43, %c0_44] : memref<8x128xf32, #tpu.memory_space<vmem>>, vector<8x128xf32>
      tpu.vector_store %arg5[%c0_43, %c0_44], %172 {strides = array<i32>} : memref<8x128xf32, #tpu.memory_space<vmem>>, vector<8x128xf32>,
      %cst_45 = arith.constant 0.000000e+00 : f32
      %174 = vector.broadcast %cst_45 : f32 to vector<8x128xf32>
      %c0_46 = arith.constant 0 : index
      %c0_47 = arith.constant 0 : index
      %175 = vector.load %arg6[%c0_46, %c0_47] : memref<8x128xf32, #tpu.memory_space<vmem>>, vector<8x128xf32>
      tpu.vector_store %arg6[%c0_46, %c0_47], %174 {strides = array<i32>} : memref<8x128xf32, #tpu.memory_space<vmem>>, vector<8x128xf32>,
    } else {
    }
    %c0 = arith.constant 0 : index
    %c0_1 = arith.constant 0 : index
    %3 = vector.load %arg1[%c0, %c0_1] : memref<8x1xi32, #tpu.memory_space<vmem>>, vector<8x1xi32>
    %c0_2 = arith.constant 0 : index
    %c0_3 = arith.constant 0 : index
    %4 = vector.load %arg3[%c0_2, %c0_3] : memref<128x512xf32, #tpu.memory_space<vmem>>, vector<128x512xf32>
    %c0_4 = arith.constant 0 : index
    %c0_5 = arith.constant 0 : index
    %5 = vector.load %arg5[%c0_4, %c0_5] : memref<8x128xf32, #tpu.memory_space<vmem>>, vector<8x128xf32>
    %c0_6 = arith.constant 0 : index
    %c0_7 = arith.constant 0 : index
    %6 = vector.load %arg6[%c0_6, %c0_7] : memref<8x128xf32, #tpu.memory_space<vmem>>, vector<8x128xf32>
    %c0_i32_8 = arith.constant 0 : i32
    %c4_i32 = arith.constant 4 : i32
    %7 = arith.muli %arg0, %c4_i32 : i32
    %8 = arith.addi %7, %c0_i32_8 : i32
    %9 = arith.index_cast %c0_i32_8 : i32 to index
    %c0_9 = arith.constant 0 : index
    %c0_10 = arith.constant 0 : index
    %10 = vector.load %arg2[%9, %c0_9, %c0_10] : memref<4x8x512xf32, #tpu.memory_space<vmem>>, vector<1x8x512xf32>
    %11 = vector.shape_cast %10 : vector<1x8x512xf32> to vector<8x512xf32>
    %cst = arith.constant dense<0.000000e+00> : vector<8x512xf32>
    %12 = tpu.matmul %5, %4, %cst {dimension_numbers = #tpu.dot_dimension_numbers<[1], [0], [0], [1], [0, 0, 1, 1], [], []>} : vector<8x128xf32>, vector<128x512xf32>, vector<8x512xf32> -> vector<8x512xf32>
    %13 = arith.addf %11, %12 : vector<8x512xf32>
    %14 = vector.extract_strided_slice %13 {offsets = [0, 0], sizes = [8, 128], strides = [1, 1]} : vector<8x512xf32> to vector<8x128xf32>
    %15 = arith.negf %14 : vector<8x128xf32>
    %16 = math.exp %15 : vector<8x128xf32>
    %cst_11 = arith.constant 1.000000e+00 : f32
    %17 = vector.broadcast %cst_11 : f32 to vector<8x128xf32>
    %18 = arith.addf %17, %16 : vector<8x128xf32>
    %19 = arith.divf %17, %18 : vector<8x128xf32>
    %20 = vector.extract_strided_slice %13 {offsets = [0, 128], sizes = [8, 128], strides = [1, 1]} : vector<8x512xf32> to vector<8x128xf32>
    %21 = arith.negf %20 : vector<8x128xf32>
    %22 = math.exp %21 : vector<8x128xf32>
    %cst_12 = arith.constant 1.000000e+00 : f32
    %23 = vector.broadcast %cst_12 : f32 to vector<8x128xf32>
    %24 = arith.addf %23, %22 : vector<8x128xf32>
    %25 = arith.divf %23, %24 : vector<8x128xf32>
    %26 = vector.extract_strided_slice %13 {offsets = [0, 256], sizes = [8, 128], strides = [1, 1]} : vector<8x512xf32> to vector<8x128xf32>
    %27 = math.tanh %26 : vector<8x128xf32>
    %28 = vector.extract_strided_slice %13 {offsets = [0, 384], sizes = [8, 128], strides = [1, 1]} : vector<8x512xf32> to vector<8x128xf32>
    %29 = arith.negf %28 : vector<8x128xf32>
    %30 = math.exp %29 : vector<8x128xf32>
    %cst_13 = arith.constant 1.000000e+00 : f32
    %31 = vector.broadcast %cst_13 : f32 to vector<8x128xf32>
    %32 = arith.addf %31, %30 : vector<8x128xf32>
    %33 = arith.divf %31, %32 : vector<8x128xf32>
    %34 = arith.mulf %25, %6 : vector<8x128xf32>
    %35 = arith.mulf %19, %27 : vector<8x128xf32>
    %36 = arith.addf %34, %35 : vector<8x128xf32>
    %37 = math.tanh %36 : vector<8x128xf32>
    %38 = arith.mulf %33, %37 : vector<8x128xf32>
    %39 = vector.broadcast %8 : i32 to vector<8x1xi32>
    %40 = arith.cmpi slt, %39, %3 : vector<8x1xi32>
    %41 = vector.shape_cast %40 : vector<8x1xi1> to vector<8x1xi1>
    %42 = vector.broadcast %41 : vector<8x1xi1> to vector<8x128xi1>
    %43 = arith.select %42, %38, %5 : vector<8x128xi1>, vector<8x128xf32>
    %44 = vector.shape_cast %40 : vector<8x1xi1> to vector<8x1xi1>
    %45 = vector.broadcast %44 : vector<8x1xi1> to vector<8x128xi1>
    %46 = arith.select %45, %36, %6 : vector<8x128xi1>, vector<8x128xf32>
    %c1_i32 = arith.constant 1 : i32
    %c4_i32_14 = arith.constant 4 : i32
    %47 = arith.muli %arg0, %c4_i32_14 : i32
    %48 = arith.addi %47, %c1_i32 : i32
    %49 = arith.index_cast %c1_i32 : i32 to index
    %c0_15 = arith.constant 0 : index
    %c0_16 = arith.constant 0 : index
    %50 = vector.load %arg2[%49, %c0_15, %c0_16] : memref<4x8x512xf32, #tpu.memory_space<vmem>>, vector<1x8x512xf32>
    %51 = vector.shape_cast %50 : vector<1x8x512xf32> to vector<8x512xf32>
    %cst_17 = arith.constant dense<0.000000e+00> : vector<8x512xf32>
    %52 = tpu.matmul %43, %4, %cst_17 {dimension_numbers = #tpu.dot_dimension_numbers<[1], [0], [0], [1], [0, 0, 1, 1], [], []>} : vector<8x128xf32>, vector<128x512xf32>, vector<8x512xf32> -> vector<8x512xf32>
    %53 = arith.addf %51, %52 : vector<8x512xf32>
    %54 = vector.extract_strided_slice %53 {offsets = [0, 0], sizes = [8, 128], strides = [1, 1]} : vector<8x512xf32> to vector<8x128xf32>
    %55 = arith.negf %54 : vector<8x128xf32>
    %56 = math.exp %55 : vector<8x128xf32>
    %cst_18 = arith.constant 1.000000e+00 : f32
    %57 = vector.broadcast %cst_18 : f32 to vector<8x128xf32>
    %58 = arith.addf %57, %56 : vector<8x128xf32>
    %59 = arith.divf %57, %58 : vector<8x128xf32>
    %60 = vector.extract_strided_slice %53 {offsets = [0, 128], sizes = [8, 128], strides = [1, 1]} : vector<8x512xf32> to vector<8x128xf32>
    %61 = arith.negf %60 : vector<8x128xf32>
    %62 = math.exp %61 : vector<8x128xf32>
    %cst_19 = arith.constant 1.000000e+00 : f32
    %63 = vector.broadcast %cst_19 : f32 to vector<8x128xf32>
    %64 = arith.addf %63, %62 : vector<8x128xf32>
    %65 = arith.divf %63, %64 : vector<8x128xf32>
    %66 = vector.extract_strided_slice %53 {offsets = [0, 256], sizes = [8, 128], strides = [1, 1]} : vector<8x512xf32> to vector<8x128xf32>
    %67 = math.tanh %66 : vector<8x128xf32>
    %68 = vector.extract_strided_slice %53 {offsets = [0, 384], sizes = [8, 128], strides = [1, 1]} : vector<8x512xf32> to vector<8x128xf32>
    %69 = arith.negf %68 : vector<8x128xf32>
    %70 = math.exp %69 : vector<8x128xf32>
    %cst_20 = arith.constant 1.000000e+00 : f32
    %71 = vector.broadcast %cst_20 : f32 to vector<8x128xf32>
    %72 = arith.addf %71, %70 : vector<8x128xf32>
    %73 = arith.divf %71, %72 : vector<8x128xf32>
    %74 = arith.mulf %65, %46 : vector<8x128xf32>
    %75 = arith.mulf %59, %67 : vector<8x128xf32>
    %76 = arith.addf %74, %75 : vector<8x128xf32>
    %77 = math.tanh %76 : vector<8x128xf32>
    %78 = arith.mulf %73, %77 : vector<8x128xf32>
    %79 = vector.broadcast %48 : i32 to vector<8x1xi32>
    %80 = arith.cmpi slt, %79, %3 : vector<8x1xi32>
    %81 = vector.shape_cast %80 : vector<8x1xi1> to vector<8x1xi1>
    %82 = vector.broadcast %81 : vector<8x1xi1> to vector<8x128xi1>
    %83 = arith.select %82, %78, %43 : vector<8x128xi1>, vector<8x128xf32>
    %84 = vector.shape_cast %80 : vector<8x1xi1> to vector<8x1xi1>
    %85 = vector.broadcast %84 : vector<8x1xi1> to vector<8x128xi1>
    %86 = arith.select %85, %76, %46 : vector<8x128xi1>, vector<8x128xf32>
    %c2_i32 = arith.constant 2 : i32
    %c4_i32_21 = arith.constant 4 : i32
    %87 = arith.muli %arg0, %c4_i32_21 : i32
    %88 = arith.addi %87, %c2_i32 : i32
    %89 = arith.index_cast %c2_i32 : i32 to index
    %c0_22 = arith.constant 0 : index
    %c0_23 = arith.constant 0 : index
    %90 = vector.load %arg2[%89, %c0_22, %c0_23] : memref<4x8x512xf32, #tpu.memory_space<vmem>>, vector<1x8x512xf32>
    %91 = vector.shape_cast %90 : vector<1x8x512xf32> to vector<8x512xf32>
    %cst_24 = arith.constant dense<0.000000e+00> : vector<8x512xf32>
    %92 = tpu.matmul %83, %4, %cst_24 {dimension_numbers = #tpu.dot_dimension_numbers<[1], [0], [0], [1], [0, 0, 1, 1], [], []>} : vector<8x128xf32>, vector<128x512xf32>, vector<8x512xf32> -> vector<8x512xf32>
    %93 = arith.addf %91, %92 : vector<8x512xf32>
    %94 = vector.extract_strided_slice %93 {offsets = [0, 0], sizes = [8, 128], strides = [1, 1]} : vector<8x512xf32> to vector<8x128xf32>
    %95 = arith.negf %94 : vector<8x128xf32>
    %96 = math.exp %95 : vector<8x128xf32>
    %cst_25 = arith.constant 1.000000e+00 : f32
    %97 = vector.broadcast %cst_25 : f32 to vector<8x128xf32>
    %98 = arith.addf %97, %96 : vector<8x128xf32>
    %99 = arith.divf %97, %98 : vector<8x128xf32>
    %100 = vector.extract_strided_slice %93 {offsets = [0, 128], sizes = [8, 128], strides = [1, 1]} : vector<8x512xf32> to vector<8x128xf32>
    %101 = arith.negf %100 : vector<8x128xf32>
    %102 = math.exp %101 : vector<8x128xf32>
    %cst_26 = arith.constant 1.000000e+00 : f32
    %103 = vector.broadcast %cst_26 : f32 to vector<8x128xf32>
    %104 = arith.addf %103, %102 : vector<8x128xf32>
    %105 = arith.divf %103, %104 : vector<8x128xf32>
    %106 = vector.extract_strided_slice %93 {offsets = [0, 256], sizes = [8, 128], strides = [1, 1]} : vector<8x512xf32> to vector<8x128xf32>
    %107 = math.tanh %106 : vector<8x128xf32>
    %108 = vector.extract_strided_slice %93 {offsets = [0, 384], sizes = [8, 128], strides = [1, 1]} : vector<8x512xf32> to vector<8x128xf32>
    %109 = arith.negf %108 : vector<8x128xf32>
    %110 = math.exp %109 : vector<8x128xf32>
    %cst_27 = arith.constant 1.000000e+00 : f32
    %111 = vector.broadcast %cst_27 : f32 to vector<8x128xf32>
    %112 = arith.addf %111, %110 : vector<8x128xf32>
    %113 = arith.divf %111, %112 : vector<8x128xf32>
    %114 = arith.mulf %105, %86 : vector<8x128xf32>
    %115 = arith.mulf %99, %107 : vector<8x128xf32>
    %116 = arith.addf %114, %115 : vector<8x128xf32>
    %117 = math.tanh %116 : vector<8x128xf32>
    %118 = arith.mulf %113, %117 : vector<8x128xf32>
    %119 = vector.broadcast %88 : i32 to vector<8x1xi32>
    %120 = arith.cmpi slt, %119, %3 : vector<8x1xi32>
    %121 = vector.shape_cast %120 : vector<8x1xi1> to vector<8x1xi1>
    %122 = vector.broadcast %121 : vector<8x1xi1> to vector<8x128xi1>
    %123 = arith.select %122, %118, %83 : vector<8x128xi1>, vector<8x128xf32>
    %124 = vector.shape_cast %120 : vector<8x1xi1> to vector<8x1xi1>
    %125 = vector.broadcast %124 : vector<8x1xi1> to vector<8x128xi1>
    %126 = arith.select %125, %116, %86 : vector<8x128xi1>, vector<8x128xf32>
    %c3_i32 = arith.constant 3 : i32
    %c4_i32_28 = arith.constant 4 : i32
    %127 = arith.muli %arg0, %c4_i32_28 : i32
    %128 = arith.addi %127, %c3_i32 : i32
    %129 = arith.index_cast %c3_i32 : i32 to index
    %c0_29 = arith.constant 0 : index
    %c0_30 = arith.constant 0 : index
    %130 = vector.load %arg2[%129, %c0_29, %c0_30] : memref<4x8x512xf32, #tpu.memory_space<vmem>>, vector<1x8x512xf32>
    %131 = vector.shape_cast %130 : vector<1x8x512xf32> to vector<8x512xf32>
    %cst_31 = arith.constant dense<0.000000e+00> : vector<8x512xf32>
    %132 = tpu.matmul %123, %4, %cst_31 {dimension_numbers = #tpu.dot_dimension_numbers<[1], [0], [0], [1], [0, 0, 1, 1], [], []>} : vector<8x128xf32>, vector<128x512xf32>, vector<8x512xf32> -> vector<8x512xf32>
    %133 = arith.addf %131, %132 : vector<8x512xf32>
    %134 = vector.extract_strided_slice %133 {offsets = [0, 0], sizes = [8, 128], strides = [1, 1]} : vector<8x512xf32> to vector<8x128xf32>
    %135 = arith.negf %134 : vector<8x128xf32>
    %136 = math.exp %135 : vector<8x128xf32>
    %cst_32 = arith.constant 1.000000e+00 : f32
    %137 = vector.broadcast %cst_32 : f32 to vector<8x128xf32>
    %138 = arith.addf %137, %136 : vector<8x128xf32>
    %139 = arith.divf %137, %138 : vector<8x128xf32>
    %140 = vector.extract_strided_slice %133 {offsets = [0, 128], sizes = [8, 128], strides = [1, 1]} : vector<8x512xf32> to vector<8x128xf32>
    %141 = arith.negf %140 : vector<8x128xf32>
    %142 = math.exp %141 : vector<8x128xf32>
    %cst_33 = arith.constant 1.000000e+00 : f32
    %143 = vector.broadcast %cst_33 : f32 to vector<8x128xf32>
    %144 = arith.addf %143, %142 : vector<8x128xf32>
    %145 = arith.divf %143, %144 : vector<8x128xf32>
    %146 = vector.extract_strided_slice %133 {offsets = [0, 256], sizes = [8, 128], strides = [1, 1]} : vector<8x512xf32> to vector<8x128xf32>
    %147 = math.tanh %146 : vector<8x128xf32>
    %148 = vector.extract_strided_slice %133 {offsets = [0, 384], sizes = [8, 128], strides = [1, 1]} : vector<8x512xf32> to vector<8x128xf32>
    %149 = arith.negf %148 : vector<8x128xf32>
    %150 = math.exp %149 : vector<8x128xf32>
    %cst_34 = arith.constant 1.000000e+00 : f32
    %151 = vector.broadcast %cst_34 : f32 to vector<8x128xf32>
    %152 = arith.addf %151, %150 : vector<8x128xf32>
    %153 = arith.divf %151, %152 : vector<8x128xf32>
    %154 = arith.mulf %145, %126 : vector<8x128xf32>
    %155 = arith.mulf %139, %147 : vector<8x128xf32>
    %156 = arith.addf %154, %155 : vector<8x128xf32>
    %157 = math.tanh %156 : vector<8x128xf32>
    %158 = arith.mulf %153, %157 : vector<8x128xf32>
    %159 = vector.broadcast %128 : i32 to vector<8x1xi32>
    %160 = arith.cmpi slt, %159, %3 : vector<8x1xi32>
    %161 = vector.shape_cast %160 : vector<8x1xi1> to vector<8x1xi1>
    %162 = vector.broadcast %161 : vector<8x1xi1> to vector<8x128xi1>
    %163 = arith.select %162, %158, %123 : vector<8x128xi1>, vector<8x128xf32>
    %164 = vector.shape_cast %160 : vector<8x1xi1> to vector<8x1xi1>
    %165 = vector.broadcast %164 : vector<8x1xi1> to vector<8x128xi1>
    %166 = arith.select %165, %156, %126 : vector<8x128xi1>, vector<8x128xf32>
    %c4_i32_35 = arith.constant 4 : i32
    %c0_36 = arith.constant 0 : index
    %c0_37 = arith.constant 0 : index
    %167 = vector.load %arg5[%c0_36, %c0_37] : memref<8x128xf32, #tpu.memory_space<vmem>>, vector<8x128xf32>
    tpu.vector_store %arg5[%c0_36, %c0_37], %163 {strides = array<i32>} : memref<8x128xf32, #tpu.memory_space<vmem>>, vector<8x128xf32>,
    %c0_38 = arith.constant 0 : index
    %c0_39 = arith.constant 0 : index
    %168 = vector.load %arg6[%c0_38, %c0_39] : memref<8x128xf32, #tpu.memory_space<vmem>>, vector<8x128xf32>
    tpu.vector_store %arg6[%c0_38, %c0_39], %166 {strides = array<i32>} : memref<8x128xf32, #tpu.memory_space<vmem>>, vector<8x128xf32>,
    %c1_i32_40 = arith.constant 1 : i32
    %169 = arith.cmpi eq, %arg0, %c1_i32_40 : i32
    %170 = arith.extui %169 : i1 to i32
    %c0_i32_41 = arith.constant 0 : i32
    %171 = arith.cmpi ne, %170, %c0_i32_41 : i32
    scf.if %171 {
      %c0_42 = arith.constant 0 : index
      %c0_43 = arith.constant 0 : index
      %172 = vector.load %arg4[%c0_42, %c0_43] : memref<8x128xf32, #tpu.memory_space<vmem>>, vector<8x128xf32>
      tpu.vector_store %arg4[%c0_42, %c0_43], %163 {strides = array<i32>} : memref<8x128xf32, #tpu.memory_space<vmem>>, vector<8x128xf32>,
    } else {
    }
    return
  }
  func.func @transform_0(%arg0: i32) -> (i32, i32) {
    %c0_i32 = arith.constant 0 : i32
    %c0_i32_0 = arith.constant 0 : i32
    %c0_i32_1 = arith.constant 0 : i32
    return %c0_i32, %c0_i32_0 : i32, i32
  }
  func.func @transform_1(%arg0: i32) -> (i32, i32, i32) {
    %c0_i32 = arith.constant 0 : i32
    %c0_i32_0 = arith.constant 0 : i32
    %c0_i32_1 = arith.constant 0 : i32
    return %arg0, %c0_i32, %c0_i32_0 : i32, i32, i32
  }
  func.func @transform_2(%arg0: i32) -> (i32, i32) {
    %c0_i32 = arith.constant 0 : i32
    %c0_i32_0 = arith.constant 0 : i32
    %c0_i32_1 = arith.constant 0 : i32
    return %c0_i32, %c0_i32_0 : i32, i32
  }
  func.func @transform_3(%arg0: i32) -> (i32, i32) {
    %c0_i32 = arith.constant 0 : i32
    %c0_i32_0 = arith.constant 0 : i32
    %c0_i32_1 = arith.constant 0 : i32
    return %c0_i32, %c0_i32_0 : i32, i32
  }
}

</mosaic_0001>

<llo_original>
// kernel: tpu_custom_call.1
$region0: #{tpu_custom_call.1}
  #allocation0 [shape = 'u32[]', space=smem, size = 0x4, offset = 0x4, fixed_abs, tag = 'smem constant byte address 0x4 - core index']
  #allocation1 [shape = 'u32[72,128]{1,0:T(1,128)}', space=vmem, size = 0x9000, scoped, tag = 'internal scratch']
  #allocation2 [shape = 'f32[8,128]{1,0:T(8,128)}', space=vmem, size = 0x1000, scoped, tag = 'scratch operand']
  #allocation3 [shape = 'f32[8,128]{1,0:T(8,128)}', space=vmem, size = 0x1000, scoped, tag = 'scratch operand']
  %s0 = inlined_call_operand.vmem [shape: s32[8,1], index: 0, kind: input, shape index: {}]
  %s1 = inlined_call_operand.hbm [shape: f32[8,8,512], index: 1, kind: input, shape index: {}]
  %s2 = inlined_call_operand.hbm [shape: f32[128,512], index: 2, kind: input, shape index: {}]
  %s3 = inlined_call_operand.hbm [shape: f32[8,128], index: 3, kind: output, shape index: {}]
  %s4 = sld [smem:[#allocation0]]
  $region61: #{tpu_custom_call.1} parent=0
    _
  %s6 = ssub.s32 1, %s4
  %s7 = scalar_select 0, %s6, %s4
  $region1: #{tpu_custom_call.1} parent=0
    #allocation4 [shape = 'u8[131072]{0}', space=vmem, size = 0x20000, scoped, tag = 'input window, operand 1']
    #allocation5 [shape = 's32[2]{0}', space=sflag, size = 0x8, scoped, tag = 'scoped memory for tpu_custom_call.1']
    #allocation6 [shape = 's32[2]{0}', space=sflag, size = 0x8, scoped, tag = 'scoped memory for tpu_custom_call.1']
    #allocation7 [shape = 'u8[262144]{0}', space=vmem, size = 0x40000, scoped, tag = 'input window, operand 2, single buffered']
    #allocation8 [shape = 's32[1]{0}', space=sflag, size = 0x4, scoped, tag = 'scoped memory for tpu_custom_call.1']
    #allocation9 [shape = 'u8[4096]{0}', space=vmem, size = 0x1000, scoped, tag = 'output window, operand 0, single buffered']
    %8 = vsyncpa [#allocation5], 0
    %s9 = scalar_lea.sflag [#allocation5], 1
    %10 = vsyncpa %s9, 0
    %11 = vsyncpa [#allocation8], 0
    %12 = vsyncpa [#allocation6], 0
    loop: start=0, step=1, limit=4
    $region2: #{tpu_custom_call.1} parent=1 // loop_pre_header
      _
    $region3: #{tpu_custom_call.1} parent=1 // loop_header
      %s14 = sphi 0, %s18
      %p15 = scmp.ge.s32.totalorder %s14, 4
      %s22 = sphi 0, %s22
      %s24 = sphi 0, %s22
      %s25 = sphi 0, %s24
      %s39 = sphi 0, %s25
      %s45 = sphi 0, %s47
      %s48 = sphi 0, %s45
      %s49 = sphi 0, %s48
      %s65 = sphi 0, %s49
      %s69 = sphi 0, %s69
      %s71 = sphi 0, %s69
      %s72 = sphi 0, %s71
      %s86 = sphi 0, %s72
      %s90 = sphi 0, %s90
      %s92 = sphi 0, %s90
      %s93 = sphi 0, %s92
      %s107 = sphi 0, %s93
    $region4: #{tpu_custom_call.1} parent=1 // loop_header_branch
      %17 = sbr.rel (%p15) target = $region8
    $region5: #{tpu_custom_call.1} parent=1 // loop_body
      %s19 = ssub.s32 %s14, 1
      %s20 = ssub.s32 %s14, 2
      %s21 = sadd.s32 %s14, 1
      %s23 = sadd.s32 %s22, 1
      %p26 = scmp.eq.s32.totalorder %s14, 1
      %p27 = scmp.ne.s32.totalorder %s22, %s24
      %p28 = scmp.eq.s32.totalorder %s14, 0
      %p29 = por %p27, %p28
      %p30 = scmp.ne.s32.totalorder %s22, %s24
      %p31 = scmp.eq.s32.totalorder %s19, 1
      %p32 = por %p30, %p31
      %p33 = scmp.ne.s32.totalorder %s24, %s25
      %p34 = scmp.eq.s32.totalorder %s19, 0
      %p35 = por %p33, %p34
      %p36 = scmp.ne.s32.totalorder %s24, %s25
      %p37 = scmp.eq.s32.totalorder %s20, 1
      %p38 = por %p36, %p37
      %p40 = scmp.ne.s32.totalorder %s25, %s39
      %p41 = scmp.eq.s32.totalorder %s20, 0
      %p42 = por %p40, %p41
      %s43 = ssub.s32 %s14, %s21
      %p44 = scmp.eq.s32.totalorder %s43, 0
      %s46 = sadd.s32 %s45, 1
      %s47 = scalar_select %p44, %s45, %s46
      %p50 = pneg %p44
      %p51 = scmp.eq.s32.totalorder %s14, 1
      %p52 = por %p50, %p51
      %p53 = scmp.ne.s32.totalorder %s45, %s48
      %p54 = scmp.eq.s32.totalorder %s14, 0
      %p55 = por %p53, %p54
      %p56 = scmp.ne.s32.totalorder %s45, %s48
      %p57 = scmp.eq.s32.totalorder %s19, 1
      %p58 = por %p56, %p57
      %p59 = scmp.ne.s32.totalorder %s48, %s49
      %p60 = scmp.eq.s32.totalorder %s19, 0
      %p61 = por %p59, %p60
      %p62 = scmp.ne.s32.totalorder %s48, %s49
      %p63 = scmp.eq.s32.totalorder %s20, 1
      %p64 = por %p62, %p63
      %p66 = scmp.ne.s32.totalorder %s49, %s65
      %p67 = scmp.eq.s32.totalorder %s20, 0
      %p68 = por %p66, %p67
      %s70 = sadd.s32 %s69, 1
      %p73 = scmp.eq.s32.totalorder %s14, 1
      %p74 = scmp.ne.s32.totalorder %s69, %s71
      %p75 = scmp.eq.s32.totalorder %s14, 0
      %p76 = por %p74, %p75
      %p77 = scmp.ne.s32.totalorder %s69, %s71
      %p78 = scmp.eq.s32.totalorder %s19, 1
      %p79 = por %p77, %p78
      %p80 = scmp.ne.s32.totalorder %s71, %s72
      %p81 = scmp.eq.s32.totalorder %s19, 0
      %p82 = por %p80, %p81
      %p83 = scmp.ne.s32.totalorder %s71, %s72
      %p84 = scmp.eq.s32.totalorder %s20, 1
      %p85 = por %p83, %p84
      %p87 = scmp.ne.s32.totalorder %s72, %s86
      %p88 = scmp.eq.s32.totalorder %s20, 0
      %p89 = por %p87, %p88
      %s91 = sadd.s32 %s90, 1
      %p94 = scmp.eq.s32.totalorder %s14, 1
      %p95 = scmp.ne.s32.totalorder %s90, %s92
      %p96 = scmp.eq.s32.totalorder %s14, 0
      %p97 = por %p95, %p96
      %p98 = scmp.ne.s32.totalorder %s90, %s92
      %p99 = scmp.eq.s32.totalorder %s19, 1
      %p100 = por %p98, %p99
      %p101 = scmp.ne.s32.totalorder %s92, %s93
      %p102 = scmp.eq.s32.totalorder %s19, 0
      %p103 = por %p101, %p102
      %p104 = scmp.ne.s32.totalorder %s92, %s93
      %p105 = scmp.eq.s32.totalorder %s20, 1
      %p106 = por %p104, %p105
      %p108 = scmp.ne.s32.totalorder %s93, %s107
      %p109 = scmp.eq.s32.totalorder %s20, 0
      %p110 = por %p108, %p109
      %p111 = scmp.le.s32.totalorder 1, %s14
      %p112 = scmp.lt.s32.totalorder %s14, 3
      %p113 = pnand %p111, %p112
      %p114 = pneg %p113
      // Predicated region
      $region9: #{tpu_custom_call.1} parent=5 // pred_check
        _
      $region10: #{tpu_custom_call.1} parent=5 // pred_check_branch
        %116 = sbr.rel (%p113) target = $region12
      $region11: #{tpu_custom_call.1} parent=5 // pred_region
        %s117 = ssub.s32 %s14, 1
        // Predicated region
        $region13: #{tpu_custom_call.1} parent=11 // pred_check
          %p118 = pneg %p35
        $region14: #{tpu_custom_call.1} parent=11 // pred_check_branch
          %120 = sbr.rel (%p118) target = $region16
        $region15: #{tpu_custom_call.1} parent=11 // pred_region
          _
        $region16: #{tpu_custom_call.1} parent=11 // pred_fallthru
          _
        // Predicated region
        $region17: #{tpu_custom_call.1} parent=11 // pred_check
          %p121 = pneg %p82
        $region18: #{tpu_custom_call.1} parent=11 // pred_check_branch
          %123 = sbr.rel (%p121) target = $region20
        $region19: #{tpu_custom_call.1} parent=11 // pred_region
          %125 = vsyncadd [#allocation8], 0
          %s126 = sshll.u32 %s2, 4
          %s127 = int_to_ptr.hbm [resolvable:$true] %s126
          %s128 = sshll.u32 [#allocation7], 4
          %s129 = int_to_ptr.vmem [resolvable:$true] %s128
          %134 = dma.hbm_to_vmem [thread:$0]  %s127, 8192, %s129, [#allocation8], 512, 512, 32
        $region20: #{tpu_custom_call.1} parent=11 // pred_fallthru
          _
      $region12: #{tpu_custom_call.1} parent=5 // pred_fallthru
        _
      %p135 = scmp.lt.s32.totalorder %s14, 2
      // Predicated region
      $region21: #{tpu_custom_call.1} parent=5 // pred_check
        %p136 = pneg %p135
      $region22: #{tpu_custom_call.1} parent=5 // pred_check_branch
        %138 = sbr.rel (%p136) target = $region24
      $region23: #{tpu_custom_call.1} parent=5 // pred_region
        // Predicated region
        $region25: #{tpu_custom_call.1} parent=23 // pred_check
          %p139 = pneg %p55
        $region26: #{tpu_custom_call.1} parent=23 // pred_check_branch
          %141 = sbr.rel (%p139) target = $region28
        $region27: #{tpu_custom_call.1} parent=23 // pred_region
          %s142 = sand.u32 %s45, 1
          %s143 = scalar_lea.sflag [#allocation5], %s142
          %s144 = sand.u32 %s45, 1
          %s145 = smul.addr %s144, 128
          %s146 = scalar_lea.vmem [#allocation4], %s145
          %s147 = smul.u32 4, %s14
          %149 = vsyncadd %s143, 0
          %s150 = smul.addr %s147, 4
          %s151 = smul.addr %s150, 8
          %s152 = scalar_lea.hbm %s1, %s151
          %s153 = sshll.u32 %s152, 4
          %s154 = int_to_ptr.hbm [resolvable:$true] %s153
          %s155 = sshll.u32 %s146, 4
          %s156 = int_to_ptr.vmem [resolvable:$true] %s155
          %161 = dma.hbm_to_vmem [thread:$0]  %s154, 2048, %s156, %s143, 512, 512, 32
        $region28: #{tpu_custom_call.1} parent=23 // pred_fallthru
          _
      $region24: #{tpu_custom_call.1} parent=5 // pred_fallthru
        _
      %p162 = scmp.le.s32.totalorder 1, %s14
      %p163 = scmp.lt.s32.totalorder %s14, 3
      %p164 = pnand %p162, %p163
      %p165 = pneg %p164
      // Predicated region
      $region29: #{tpu_custom_call.1} parent=5 // pred_check
        _
      $region30: #{tpu_custom_call.1} parent=5 // pred_check_branch
        %167 = sbr.rel (%p164) target = $region32
      $region31: #{tpu_custom_call.1} parent=5 // pred_region
        %s168 = ssub.s32 %s14, 1
        %s169 = sand.u32 %s48, 1
        %s170 = scalar_lea.sflag [#allocation5], %s169
        %s171 = sand.u32 %s48, 1
        %s172 = smul.addr %s171, 128
        %s173 = scalar_lea.vmem [#allocation4], %s172
        // Predicated region
        $region33: #{tpu_custom_call.1} parent=31 // pred_check
          %p174 = pneg %p61
        $region34: #{tpu_custom_call.1} parent=31 // pred_check_branch
          %176 = sbr.rel (%p174) target = $region36
        $region35: #{tpu_custom_call.1} parent=31 // pred_region
          %178 = dma.done %s170, 2048
        $region36: #{tpu_custom_call.1} parent=31 // pred_fallthru
          _
        // Predicated region
        $region37: #{tpu_custom_call.1} parent=31 // pred_check
          %p179 = pneg %p82
        $region38: #{tpu_custom_call.1} parent=31 // pred_check_branch
          %181 = sbr.rel (%p179) target = $region40
        $region39: #{tpu_custom_call.1} parent=31 // pred_region
          %183 = dma.done [#allocation8], 8192
        $region40: #{tpu_custom_call.1} parent=31 // pred_fallthru
          _
        %p184 = pneg %p35
        %p185 = pneg %p32
        %s186 = sand.u32 %s48, 1
        %s187 = scalar_lea.sflag [#allocation5], %s186
        %s188 = sand.u32 %s48, 1
        %s189 = smul.addr %s188, 128
        %s190 = scalar_lea.vmem [#allocation4], %s189
        %p191 = pneg %p61
        %p192 = pneg %p58
        %p193 = pneg %p82
        %p194 = pneg %p79
        %p195 = pneg %p103
        %p196 = pneg %p100
        %s197 = smul.u32 4, %s19
        %p198 = scmp.eq.s32.totalorder %s19, 0
        // Predicated region
        $region41: #{tpu_custom_call.1} parent=31 // pred_check
          %p199 = pneg %p198
        $region42: #{tpu_custom_call.1} parent=31 // pred_check_branch
          %201 = sbr.rel (%p199) target = $region44
        $region43: #{tpu_custom_call.1} parent=31 // pred_region
          %202 = vst [vmem:[#allocation2] sm:$0xff] 0.0
          %203 = vst [vmem:[#allocation3] sm:$0xff] 0.0
        $region44: #{tpu_custom_call.1} parent=31 // pred_fallthru
          _
        %v204 = vld [vmem:[%s0] sm:$0xff]
        %v205 = vld [vmem:[#allocation7] sm:$0xff]
        %v206 = vld [vmem:[#allocation7 + $0x8] sm:$0xff]
        %v207 = vld [vmem:[#allocation7 + $0x10] sm:$0xff]
        %v208 = vld [vmem:[#allocation7 + $0x18] sm:$0xff]
        %v209 = vld [vmem:[#allocation7 + $0x20] sm:$0xff]
        %v210 = vld [vmem:[#allocation7 + $0x28] sm:$0xff]
        %v211 = vld [vmem:[#allocation7 + $0x30] sm:$0xff]
        %v212 = vld [vmem:[#allocation7 + $0x38] sm:$0xff]
        %v213 = vld [vmem:[#allocation7 + $0x40] sm:$0xff]
        %v214 = vld [vmem:[#allocation7 + $0x48] sm:$0xff]
        %v215 = vld [vmem:[#allocation7 + $0x50] sm:$0xff]
        %v216 = vld [vmem:[#allocation7 + $0x58] sm:$0xff]
        %v217 = vld [vmem:[#allocation7 + $0x60] sm:$0xff]
        %v218 = vld [vmem:[#allocation7 + $0x68] sm:$0xff]
        %v219 = vld [vmem:[#allocation7 + $0x70] sm:$0xff]
        %v220 = vld [vmem:[#allocation7 + $0x78] sm:$0xff]
        %v221 = vld [vmem:[#allocation7 + $0x80] sm:$0xff]
        %v222 = vld [vmem:[#allocation7 + $0x88] sm:$0xff]
        %v223 = vld [vmem:[#allocation7 + $0x90] sm:$0xff]
        %v224 = vld [vmem:[#allocation7 + $0x98] sm:$0xff]
        %v225 = vld [vmem:[#allocation7 + $0xa0] sm:$0xff]
        %v226 = vld [vmem:[#allocation7 + $0xa8] sm:$0xff]
        %v227 = vld [vmem:[#allocation7 + $0xb0] sm:$0xff]
        %v228 = vld [vmem:[#allocation7 + $0xb8] sm:$0xff]
        %v229 = vld [vmem:[#allocation7 + $0xc0] sm:$0xff]
        %v230 = vld [vmem:[#allocation7 + $0xc8] sm:$0xff]
        %v231 = vld [vmem:[#allocation7 + $0xd0] sm:$0xff]
        %v232 = vld [vmem:[#allocation7 + $0xd8] sm:$0xff]
        %v233 = vld [vmem:[#allocation7 + $0xe0] sm:$0xff]
        %v234 = vld [vmem:[#allocation7 + $0xe8] sm:$0xff]
        %v235 = vld [vmem:[#allocation7 + $0xf0] sm:$0xff]
        %v236 = vld [vmem:[#allocation7 + $0xf8] sm:$0xff]
        %v237 = vld [vmem:[#allocation7 + $0x100] sm:$0xff]
        %v238 = vld [vmem:[#allocation7 + $0x108] sm:$0xff]
        %v239 = vld [vmem:[#allocation7 + $0x110] sm:$0xff]
        %v240 = vld [vmem:[#allocation7 + $0x118] sm:$0xff]
        %v241 = vld [vmem:[#allocation7 + $0x120] sm:$0xff]
        %v242 = vld [vmem:[#allocation7 + $0x128] sm:$0xff]
        %v243 = vld [vmem:[#allocation7 + $0x130] sm:$0xff]
        %v244 = vld [vmem:[#allocation7 + $0x138] sm:$0xff]
        %v245 = vld [vmem:[#allocation7 + $0x140] sm:$0xff]
        %v246 = vld [vmem:[#allocation7 + $0x148] sm:$0xff]
        %v247 = vld [vmem:[#allocation7 + $0x150] sm:$0xff]
        %v248 = vld [vmem:[#allocation7 + $0x158] sm:$0xff]
        %v249 = vld [vmem:[#allocation7 + $0x160] sm:$0xff]
        %v250 = vld [vmem:[#allocation7 + $0x168] sm:$0xff]
        %v251 = vld [vmem:[#allocation7 + $0x170] sm:$0xff]
        %v252 = vld [vmem:[#allocation7 + $0x178] sm:$0xff]
        %v253 = vld [vmem:[#allocation7 + $0x180] sm:$0xff]
        %v254 = vld [vmem:[#allocation7 + $0x188] sm:$0xff]
        %v255 = vld [vmem:[#allocation7 + $0x190] sm:$0xff]
        %v256 = vld [vmem:[#allocation7 + $0x198] sm:$0xff]
        %v257 = vld [vmem:[#allocation7 + $0x1a0] sm:$0xff]
        %v258 = vld [vmem:[#allocation7 + $0x1a8] sm:$0xff]
        %v259 = vld [vmem:[#allocation7 + $0x1b0] sm:$0xff]
        %v260 = vld [vmem:[#allocation7 + $0x1b8] sm:$0xff]
        %v261 = vld [vmem:[#allocation7 + $0x1c0] sm:$0xff]
        %v262 = vld [vmem:[#allocation7 + $0x1c8] sm:$0xff]
        %v263 = vld [vmem:[#allocation7 + $0x1d0] sm:$0xff]
        %v264 = vld [vmem:[#allocation7 + $0x1d8] sm:$0xff]
        %v265 = vld [vmem:[#allocation7 + $0x1e0] sm:$0xff]
        %v266 = vld [vmem:[#allocation7 + $0x1e8] sm:$0xff]
        %v267 = vld [vmem:[#allocation7 + $0x1f0] sm:$0xff]
        %v268 = vld [vmem:[#allocation7 + $0x1f8] sm:$0xff]
        %v269 = vld [vmem:[#allocation2] sm:$0xff]
        %v270 = vld [vmem:[#allocation3] sm:$0xff]
        %s271 = smul.u32 %s19, 4
        %v272 = vld [vmem:[%s173] sm:$0xff]
        %v273 = vld [vmem:[%s173 + $0x8] sm:$0xff]
        %v274 = vld [vmem:[%s173 + $0x10] sm:$0xff]
        %v275 = vld [vmem:[%s173 + $0x18] sm:$0xff]
        %276 = vmatpush.msra.mxu0 %v265
        %277 = vmatpush.msra.mxu0 %v261
        %278 = vmatpush.msra.mxu0 %v257
        %279 = vmatpush.msra.mxu0 %v253
        %280 = vmatpush.msra.mxu0 %v249
        %281 = vmatpush.msra.mxu0 %v245
        %282 = vmatpush.msra.mxu0 %v241
        %283 = vmatpush.msra.mxu0 %v237
        %284 = vmatpush.msra.mxu0 %v233
        %285 = vmatpush.msra.mxu0 %v229
        %286 = vmatpush.msra.mxu0 %v225
        %287 = vmatpush.msra.mxu0 %v221
        %288 = vmatpush.msra.mxu0 %v217
        %289 = vmatpush.msra.mxu0 %v213
        %290 = vmatpush.msra.mxu0 %v209
        %291 = vmatpush.msra.mxu0 %v205
        %292 = vmatmul.f32.gmra.mxu0 %v269
        %v293 = vpop.f32.mrf.mxu0
        %v294 = vadd.f32 0.0, %v293
        %295 = vdwg.mxu0
        %296 = vmatpush.msra.mxu0 %v266
        %297 = vmatpush.msra.mxu0 %v262
        %298 = vmatpush.msra.mxu0 %v258
        %299 = vmatpush.msra.mxu0 %v254
        %300 = vmatpush.msra.mxu0 %v250
        %301 = vmatpush.msra.mxu0 %v246
        %302 = vmatpush.msra.mxu0 %v242
        %303 = vmatpush.msra.mxu0 %v238
        %304 = vmatpush.msra.mxu0 %v234
        %305 = vmatpush.msra.mxu0 %v230
        %306 = vmatpush.msra.mxu0 %v226
        %307 = vmatpush.msra.mxu0 %v222
        %308 = vmatpush.msra.mxu0 %v218
        %309 = vmatpush.msra.mxu0 %v214
        %310 = vmatpush.msra.mxu0 %v210
        %311 = vmatpush.msra.mxu0 %v206
        %312 = vmatmul.f32.gmra.mxu0 %v269
        %v313 = vpop.f32.mrf.mxu0
        %v314 = vadd.f32 0.0, %v313
        %315 = vdwg.mxu0
        %316 = vmatpush.msra.mxu0 %v267
        %317 = vmatpush.msra.mxu0 %v263
        %318 = vmatpush.msra.mxu0 %v259
        %319 = vmatpush.msra.mxu0 %v255
        %320 = vmatpush.msra.mxu0 %v251
        %321 = vmatpush.msra.mxu0 %v247
        %322 = vmatpush.msra.mxu0 %v243
        %323 = vmatpush.msra.mxu0 %v239
        %324 = vmatpush.msra.mxu0 %v235
        %325 = vmatpush.msra.mxu0 %v231
        %326 = vmatpush.msra.mxu0 %v227
        %327 = vmatpush.msra.mxu0 %v223
        %328 = vmatpush.msra.mxu0 %v219
        %329 = vmatpush.msra.mxu0 %v215
        %330 = vmatpush.msra.mxu0 %v211
        %331 = vmatpush.msra.mxu0 %v207
        %332 = vmatmul.f32.gmra.mxu0 %v269
        %v333 = vpop.f32.mrf.mxu0
        %v334 = vadd.f32 0.0, %v333
        %335 = vdwg.mxu0
        %336 = vmatpush.msra.mxu0 %v268
        %337 = vmatpush.msra.mxu0 %v264
        %338 = vmatpush.msra.mxu0 %v260
        %339 = vmatpush.msra.mxu0 %v256
        %340 = vmatpush.msra.mxu0 %v252
        %341 = vmatpush.msra.mxu0 %v248
        %342 = vmatpush.msra.mxu0 %v244
        %343 = vmatpush.msra.mxu0 %v240
        %344 = vmatpush.msra.mxu0 %v236
        %345 = vmatpush.msra.mxu0 %v232
        %346 = vmatpush.msra.mxu0 %v228
        %347 = vmatpush.msra.mxu0 %v224
        %348 = vmatpush.msra.mxu0 %v220
        %349 = vmatpush.msra.mxu0 %v216
        %350 = vmatpush.msra.mxu0 %v212
        %351 = vmatpush.msra.mxu0 %v208
        %352 = vmatmul.f32.gmra.mxu0 %v269
        %v353 = vpop.f32.mrf.mxu0
        %v354 = vadd.f32 0.0, %v353
        %355 = vdwg.mxu0
        %v356 = vadd.f32 %v272, %v294
        %v357 = vadd.f32 %v273, %v314
        %v358 = vadd.f32 %v274, %v334
        %v359 = vadd.f32 %v275, %v354
        %v360 = vxor.u32 %v356, 2147483648
        %v361 = vmul.f32 %v360, 1.442695
        %v362 = vpow.pop %v361
        %v363 = vadd.f32 %v362, 1.0
        %v364 = vrcp.pop %v363
        %v365 = vmul.f32 %v363, %v364
        %v366 = vsub.f32 1.0, %v365
        %v367 = vmul.f32 %v364, %v366
        %v368 = vadd.f32 %v364, %v367
        %vm369 = vweird.f32 %v363
        %vm370 = vweird.f32 %v364
        %vm371 = vmor %vm369, %vm370
        %v372 = vsel %vm371, %v364, %v368
        %v373 = vand.u32 2147483647, %v363
        %vm374 = vcmp.eq.f32.partialorder %v373, 8.507059e+37
        %v375 = vand.u32 %v363, 2147483648
        %v376 = vor.u32 1.1754944e-38, %v375
        %v377 = vsel %vm374, %v376, %v372
        %v378 = vmul.f32 1.0, %v377
        %v379 = vxor.u32 %v357, 2147483648
        %v380 = vmul.f32 %v379, 1.442695
        %v381 = vpow.pop %v380
        %v382 = vadd.f32 %v381, 1.0
        %v383 = vrcp.pop %v382
        %v384 = vmul.f32 %v382, %v383
        %v385 = vsub.f32 1.0, %v384
        %v386 = vmul.f32 %v383, %v385
        %v387 = vadd.f32 %v383, %v386
        %vm388 = vweird.f32 %v382
        %vm389 = vweird.f32 %v383
        %vm390 = vmor %vm388, %vm389
        %v391 = vsel %vm390, %v383, %v387
        %v392 = vand.u32 2147483647, %v382
        %vm393 = vcmp.eq.f32.partialorder %v392, 8.507059e+37
        %v394 = vand.u32 %v382, 2147483648
        %v395 = vor.u32 1.1754944e-38, %v394
        %v396 = vsel %vm393, %v395, %v391
        %v397 = vmul.f32 1.0, %v396
        %v398 = vtanh.pop %v358
        %v399 = vxor.u32 %v359, 2147483648
        %v400 = vmul.f32 %v399, 1.442695
        %v401 = vpow.pop %v400
        %v402 = vadd.f32 %v401, 1.0
        %v403 = vrcp.pop %v402
        %v404 = vmul.f32 %v402, %v403
        %v405 = vsub.f32 1.0, %v404
        %v406 = vmul.f32 %v403, %v405
        %v407 = vadd.f32 %v403, %v406
        %vm408 = vweird.f32 %v402
        %vm409 = vweird.f32 %v403
        %vm410 = vmor %vm408, %vm409
        %v411 = vsel %vm410, %v403, %v407
        %v412 = vand.u32 2147483647, %v402
        %vm413 = vcmp.eq.f32.partialorder %v412, 8.507059e+37
        %v414 = vand.u32 %v402, 2147483648
        %v415 = vor.u32 1.1754944e-38, %v414
        %v416 = vsel %vm413, %v415, %v411
        %v417 = vmul.f32 1.0, %v416
        %v418 = vmul.f32 %v397, %v270
        %v419 = vmul.f32 %v378, %v398
        %v420 = vadd.f32 %v418, %v419
        %v421 = vtanh.pop %v420
        %v422 = vmul.f32 %v417, %v421
        %v423 = vstv %s271
        %vm424 = vcmp.lt.s32.totalorder %v423, %v204
        %v425 = vsel %vm424, 1, 0
        %426 = vset.pattern.permute.xlu0 0
        %427 = vperm.xlu0 %426, %v425
        %v428 = vpop.permute.xlu0 %427
        %vm429 = vcmp.eq.s32.totalorder %v428, 1
        %v430 = vsel %vm429, %v422, %v269
        %v431 = vsel %vm429, %v420, %v270
        %s432 = sadd.s32 %s271, 1
        %s433 = scalar_lea.vmem %s173, 32 [#allocation4]
        %v434 = vld [vmem:[%s433] sm:$0xff]
        %v435 = vld [vmem:[%s433 + $0x8] sm:$0xff]
        %v436 = vld [vmem:[%s433 + $0x10] sm:$0xff]
        %v437 = vld [vmem:[%s433 + $0x18] sm:$0xff]
        %438 = vmatpush.msra.mxu0 %v265
        %439 = vmatpush.msra.mxu0 %v261
        %440 = vmatpush.msra.mxu0 %v257
        %441 = vmatpush.msra.mxu0 %v253
        %442 = vmatpush.msra.mxu0 %v249
        %443 = vmatpush.msra.mxu0 %v245
        %444 = vmatpush.msra.mxu0 %v241
        %445 = vmatpush.msra.mxu0 %v237
        %446 = vmatpush.msra.mxu0 %v233
        %447 = vmatpush.msra.mxu0 %v229
        %448 = vmatpush.msra.mxu0 %v225
        %449 = vmatpush.msra.mxu0 %v221
        %450 = vmatpush.msra.mxu0 %v217
        %451 = vmatpush.msra.mxu0 %v213
        %452 = vmatpush.msra.mxu0 %v209
        %453 = vmatpush.msra.mxu0 %v205
        %454 = vmatmul.f32.gmra.mxu0 %v430
        %v455 = vpop.f32.mrf.mxu0
        %v456 = vadd.f32 0.0, %v455
        %457 = vdwg.mxu0
        %458 = vmatpush.msra.mxu0 %v266
        %459 = vmatpush.msra.mxu0 %v262
        %460 = vmatpush.msra.mxu0 %v258
        %461 = vmatpush.msra.mxu0 %v254
        %462 = vmatpush.msra.mxu0 %v250
        %463 = vmatpush.msra.mxu0 %v246
        %464 = vmatpush.msra.mxu0 %v242
        %465 = vmatpush.msra.mxu0 %v238
        %466 = vmatpush.msra.mxu0 %v234
        %467 = vmatpush.msra.mxu0 %v230
        %468 = vmatpush.msra.mxu0 %v226
        %469 = vmatpush.msra.mxu0 %v222
        %470 = vmatpush.msra.mxu0 %v218
        %471 = vmatpush.msra.mxu0 %v214
        %472 = vmatpush.msra.mxu0 %v210
        %473 = vmatpush.msra.mxu0 %v206
        %474 = vmatmul.f32.gmra.mxu0 %v430
        %v475 = vpop.f32.mrf.mxu0
        %v476 = vadd.f32 0.0, %v475
        %477 = vdwg.mxu0
        %478 = vmatpush.msra.mxu0 %v267
        %479 = vmatpush.msra.mxu0 %v263
        %480 = vmatpush.msra.mxu0 %v259
        %481 = vmatpush.msra.mxu0 %v255
        %482 = vmatpush.msra.mxu0 %v251
        %483 = vmatpush.msra.mxu0 %v247
        %484 = vmatpush.msra.mxu0 %v243
        %485 = vmatpush.msra.mxu0 %v239
        %486 = vmatpush.msra.mxu0 %v235
        %487 = vmatpush.msra.mxu0 %v231
        %488 = vmatpush.msra.mxu0 %v227
        %489 = vmatpush.msra.mxu0 %v223
        %490 = vmatpush.msra.mxu0 %v219
        %491 = vmatpush.msra.mxu0 %v215
        %492 = vmatpush.msra.mxu0 %v211
        %493 = vmatpush.msra.mxu0 %v207
        %494 = vmatmul.f32.gmra.mxu0 %v430
        %v495 = vpop.f32.mrf.mxu0
        %v496 = vadd.f32 0.0, %v495
        %497 = vdwg.mxu0
        %498 = vmatpush.msra.mxu0 %v268
        %499 = vmatpush.msra.mxu0 %v264
        %500 = vmatpush.msra.mxu0 %v260
        %501 = vmatpush.msra.mxu0 %v256
        %502 = vmatpush.msra.mxu0 %v252
        %503 = vmatpush.msra.mxu0 %v248
        %504 = vmatpush.msra.mxu0 %v244
        %505 = vmatpush.msra.mxu0 %v240
        %506 = vmatpush.msra.mxu0 %v236
        %507 = vmatpush.msra.mxu0 %v232
        %508 = vmatpush.msra.mxu0 %v228
        %509 = vmatpush.msra.mxu0 %v224
        %510 = vmatpush.msra.mxu0 %v220
        %511 = vmatpush.msra.mxu0 %v216
        %512 = vmatpush.msra.mxu0 %v212
        %513 = vmatpush.msra.mxu0 %v208
        %514 = vmatmul.f32.gmra.mxu0 %v430
        %v515 = vpop.f32.mrf.mxu0
        %v516 = vadd.f32 0.0, %v515
        %517 = vdwg.mxu0
        %v518 = vadd.f32 %v434, %v456
        %v519 = vadd.f32 %v435, %v476
        %v520 = vadd.f32 %v436, %v496
        %v521 = vadd.f32 %v437, %v516
        %v522 = vxor.u32 %v518, 2147483648
        %v523 = vmul.f32 %v522, 1.442695
        %v524 = vpow.pop %v523
        %v525 = vadd.f32 %v524, 1.0
        %v526 = vrcp.pop %v525
        %v527 = vmul.f32 %v525, %v526
        %v528 = vsub.f32 1.0, %v527
        %v529 = vmul.f32 %v526, %v528
        %v530 = vadd.f32 %v526, %v529
        %vm531 = vweird.f32 %v525
        %vm532 = vweird.f32 %v526
        %vm533 = vmor %vm531, %vm532
        %v534 = vsel %vm533, %v526, %v530
        %v535 = vand.u32 2147483647, %v525
        %vm536 = vcmp.eq.f32.partialorder %v535, 8.507059e+37
        %v537 = vand.u32 %v525, 2147483648
        %v538 = vor.u32 1.1754944e-38, %v537
        %v539 = vsel %vm536, %v538, %v534
        %v540 = vmul.f32 1.0, %v539
        %v541 = vxor.u32 %v519, 2147483648
        %v542 = vmul.f32 %v541, 1.442695
        %v543 = vpow.pop %v542
        %v544 = vadd.f32 %v543, 1.0
        %v545 = vrcp.pop %v544
        %v546 = vmul.f32 %v544, %v545
        %v547 = vsub.f32 1.0, %v546
        %v548 = vmul.f32 %v545, %v547
        %v549 = vadd.f32 %v545, %v548
        %vm550 = vweird.f32 %v544
        %vm551 = vweird.f32 %v545
        %vm552 = vmor %vm550, %vm551
        %v553 = vsel %vm552, %v545, %v549
        %v554 = vand.u32 2147483647, %v544
        %vm555 = vcmp.eq.f32.partialorder %v554, 8.507059e+37
        %v556 = vand.u32 %v544, 2147483648
        %v557 = vor.u32 1.1754944e-38, %v556
        %v558 = vsel %vm555, %v557, %v553
        %v559 = vmul.f32 1.0, %v558
        %v560 = vtanh.pop %v520
        %v561 = vxor.u32 %v521, 2147483648
        %v562 = vmul.f32 %v561, 1.442695
        %v563 = vpow.pop %v562
        %v564 = vadd.f32 %v563, 1.0
        %v565 = vrcp.pop %v564
        %v566 = vmul.f32 %v564, %v565
        %v567 = vsub.f32 1.0, %v566
        %v568 = vmul.f32 %v565, %v567
        %v569 = vadd.f32 %v565, %v568
        %vm570 = vweird.f32 %v564
        %vm571 = vweird.f32 %v565
        %vm572 = vmor %vm570, %vm571
        %v573 = vsel %vm572, %v565, %v569
        %v574 = vand.u32 2147483647, %v564
        %vm575 = vcmp.eq.f32.partialorder %v574, 8.507059e+37
        %v576 = vand.u32 %v564, 2147483648
        %v577 = vor.u32 1.1754944e-38, %v576
        %v578 = vsel %vm575, %v577, %v573
        %v579 = vmul.f32 1.0, %v578
        %v580 = vmul.f32 %v559, %v431
        %v581 = vmul.f32 %v540, %v560
        %v582 = vadd.f32 %v580, %v581
        %v583 = vtanh.pop %v582
        %v584 = vmul.f32 %v579, %v583
        %v585 = vstv %s432
        %vm586 = vcmp.lt.s32.totalorder %v585, %v204
        %v587 = vsel %vm586, 1, 0
        %588 = vset.pattern.permute.xlu0 0
        %589 = vperm.xlu0 %588, %v587
        %v590 = vpop.permute.xlu0 %589
        %vm591 = vcmp.eq.s32.totalorder %v590, 1
        %v592 = vsel %vm591, %v584, %v430
        %v593 = vsel %vm591, %v582, %v431
        %s594 = sadd.s32 %s271, 2
        %s595 = scalar_lea.vmem %s173, 64 [#allocation4]
        %v596 = vld [vmem:[%s595] sm:$0xff]
        %v597 = vld [vmem:[%s595 + $0x8] sm:$0xff]
        %v598 = vld [vmem:[%s595 + $0x10] sm:$0xff]
        %v599 = vld [vmem:[%s595 + $0x18] sm:$0xff]
        %600 = vmatpush.msra.mxu0 %v265
        %601 = vmatpush.msra.mxu0 %v261
        %602 = vmatpush.msra.mxu0 %v257
        %603 = vmatpush.msra.mxu0 %v253
        %604 = vmatpush.msra.mxu0 %v249
        %605 = vmatpush.msra.mxu0 %v245
        %606 = vmatpush.msra.mxu0 %v241
        %607 = vmatpush.msra.mxu0 %v237
        %608 = vmatpush.msra.mxu0 %v233
        %609 = vmatpush.msra.mxu0 %v229
        %610 = vmatpush.msra.mxu0 %v225
        %611 = vmatpush.msra.mxu0 %v221
        %612 = vmatpush.msra.mxu0 %v217
        %613 = vmatpush.msra.mxu0 %v213
        %614 = vmatpush.msra.mxu0 %v209
        %615 = vmatpush.msra.mxu0 %v205
        %616 = vmatmul.f32.gmra.mxu0 %v592
        %v617 = vpop.f32.mrf.mxu0
        %v618 = vadd.f32 0.0, %v617
        %619 = vdwg.mxu0
        %620 = vmatpush.msra.mxu0 %v266
        %621 = vmatpush.msra.mxu0 %v262
        %622 = vmatpush.msra.mxu0 %v258
        %623 = vmatpush.msra.mxu0 %v254
        %624 = vmatpush.msra.mxu0 %v250
        %625 = vmatpush.msra.mxu0 %v246
        %626 = vmatpush.msra.mxu0 %v242
        %627 = vmatpush.msra.mxu0 %v238
        %628 = vmatpush.msra.mxu0 %v234
        %629 = vmatpush.msra.mxu0 %v230
        %630 = vmatpush.msra.mxu0 %v226
        %631 = vmatpush.msra.mxu0 %v222
        %632 = vmatpush.msra.mxu0 %v218
        %633 = vmatpush.msra.mxu0 %v214
        %634 = vmatpush.msra.mxu0 %v210
        %635 = vmatpush.msra.mxu0 %v206
        %636 = vmatmul.f32.gmra.mxu0 %v592
        %v637 = vpop.f32.mrf.mxu0
        %v638 = vadd.f32 0.0, %v637
        %639 = vdwg.mxu0
        %640 = vmatpush.msra.mxu0 %v267
        %641 = vmatpush.msra.mxu0 %v263
        %642 = vmatpush.msra.mxu0 %v259
        %643 = vmatpush.msra.mxu0 %v255
        %644 = vmatpush.msra.mxu0 %v251
        %645 = vmatpush.msra.mxu0 %v247
        %646 = vmatpush.msra.mxu0 %v243
        %647 = vmatpush.msra.mxu0 %v239
        %648 = vmatpush.msra.mxu0 %v235
        %649 = vmatpush.msra.mxu0 %v231
        %650 = vmatpush.msra.mxu0 %v227
        %651 = vmatpush.msra.mxu0 %v223
        %652 = vmatpush.msra.mxu0 %v219
        %653 = vmatpush.msra.mxu0 %v215
        %654 = vmatpush.msra.mxu0 %v211
        %655 = vmatpush.msra.mxu0 %v207
        %656 = vmatmul.f32.gmra.mxu0 %v592
        %v657 = vpop.f32.mrf.mxu0
        %v658 = vadd.f32 0.0, %v657
        %659 = vdwg.mxu0
        %660 = vmatpush.msra.mxu0 %v268
        %661 = vmatpush.msra.mxu0 %v264
        %662 = vmatpush.msra.mxu0 %v260
        %663 = vmatpush.msra.mxu0 %v256
        %664 = vmatpush.msra.mxu0 %v252
        %665 = vmatpush.msra.mxu0 %v248
        %666 = vmatpush.msra.mxu0 %v244
        %667 = vmatpush.msra.mxu0 %v240
        %668 = vmatpush.msra.mxu0 %v236
        %669 = vmatpush.msra.mxu0 %v232
        %670 = vmatpush.msra.mxu0 %v228
        %671 = vmatpush.msra.mxu0 %v224
        %672 = vmatpush.msra.mxu0 %v220
        %673 = vmatpush.msra.mxu0 %v216
        %674 = vmatpush.msra.mxu0 %v212
        %675 = vmatpush.msra.mxu0 %v208
        %676 = vmatmul.f32.gmra.mxu0 %v592
        %v677 = vpop.f32.mrf.mxu0
        %v678 = vadd.f32 0.0, %v677
        %679 = vdwg.mxu0
        %v680 = vadd.f32 %v596, %v618
        %v681 = vadd.f32 %v597, %v638
        %v682 = vadd.f32 %v598, %v658
        %v683 = vadd.f32 %v599, %v678
        %v684 = vxor.u32 %v680, 2147483648
        %v685 = vmul.f32 %v684, 1.442695
        %v686 = vpow.pop %v685
        %v687 = vadd.f32 %v686, 1.0
        %v688 = vrcp.pop %v687
        %v689 = vmul.f32 %v687, %v688
        %v690 = vsub.f32 1.0, %v689
        %v691 = vmul.f32 %v688, %v690
        %v692 = vadd.f32 %v688, %v691
        %vm693 = vweird.f32 %v687
        %vm694 = vweird.f32 %v688
        %vm695 = vmor %vm693, %vm694
        %v696 = vsel %vm695, %v688, %v692
        %v697 = vand.u32 2147483647, %v687
        %vm698 = vcmp.eq.f32.partialorder %v697, 8.507059e+37
        %v699 = vand.u32 %v687, 2147483648
        %v700 = vor.u32 1.1754944e-38, %v699
        %v701 = vsel %vm698, %v700, %v696
        %v702 = vmul.f32 1.0, %v701
        %v703 = vxor.u32 %v681, 2147483648
        %v704 = vmul.f32 %v703, 1.442695
        %v705 = vpow.pop %v704
        %v706 = vadd.f32 %v705, 1.0
        %v707 = vrcp.pop %v706
        %v708 = vmul.f32 %v706, %v707
        %v709 = vsub.f32 1.0, %v708
        %v710 = vmul.f32 %v707, %v709
        %v711 = vadd.f32 %v707, %v710
        %vm712 = vweird.f32 %v706
        %vm713 = vweird.f32 %v707
        %vm714 = vmor %vm712, %vm713
        %v715 = vsel %vm714, %v707, %v711
        %v716 = vand.u32 2147483647, %v706
        %vm717 = vcmp.eq.f32.partialorder %v716, 8.507059e+37
        %v718 = vand.u32 %v706, 2147483648
        %v719 = vor.u32 1.1754944e-38, %v718
        %v720 = vsel %vm717, %v719, %v715
        %v721 = vmul.f32 1.0, %v720
        %v722 = vtanh.pop %v682
        %v723 = vxor.u32 %v683, 2147483648
        %v724 = vmul.f32 %v723, 1.442695
        %v725 = vpow.pop %v724
        %v726 = vadd.f32 %v725, 1.0
        %v727 = vrcp.pop %v726
        %v728 = vmul.f32 %v726, %v727
        %v729 = vsub.f32 1.0, %v728
        %v730 = vmul.f32 %v727, %v729
        %v731 = vadd.f32 %v727, %v730
        %vm732 = vweird.f32 %v726
        %vm733 = vweird.f32 %v727
        %vm734 = vmor %vm732, %vm733
        %v735 = vsel %vm734, %v727, %v731
        %v736 = vand.u32 2147483647, %v726
        %vm737 = vcmp.eq.f32.partialorder %v736, 8.507059e+37
        %v738 = vand.u32 %v726, 2147483648
        %v739 = vor.u32 1.1754944e-38, %v738
        %v740 = vsel %vm737, %v739, %v735
        %v741 = vmul.f32 1.0, %v740
        %v742 = vmul.f32 %v721, %v593
        %v743 = vmul.f32 %v702, %v722
        %v744 = vadd.f32 %v742, %v743
        %v745 = vtanh.pop %v744
        %v746 = vmul.f32 %v741, %v745
        %v747 = vstv %s594
        %vm748 = vcmp.lt.s32.totalorder %v747, %v204
        %v749 = vsel %vm748, 1, 0
        %750 = vset.pattern.permute.xlu0 0
        %751 = vperm.xlu0 %750, %v749
        %v752 = vpop.permute.xlu0 %751
        %vm753 = vcmp.eq.s32.totalorder %v752, 1
        %v754 = vsel %vm753, %v746, %v592
        %v755 = vsel %vm753, %v744, %v593
        %s756 = sadd.s32 %s271, 3
        %s757 = scalar_lea.vmem %s173, 96 [#allocation4]
        %v758 = vld [vmem:[%s757] sm:$0xff]
        %v759 = vld [vmem:[%s757 + $0x8] sm:$0xff]
        %v760 = vld [vmem:[%s757 + $0x10] sm:$0xff]
        %v761 = vld [vmem:[%s757 + $0x18] sm:$0xff]
        %762 = vmatpush.msra.mxu0 %v265
        %763 = vmatpush.msra.mxu0 %v261
        %764 = vmatpush.msra.mxu0 %v257
        %765 = vmatpush.msra.mxu0 %v253
        %766 = vmatpush.msra.mxu0 %v249
        %767 = vmatpush.msra.mxu0 %v245
        %768 = vmatpush.msra.mxu0 %v241
        %769 = vmatpush.msra.mxu0 %v237
        %770 = vmatpush.msra.mxu0 %v233
        %771 = vmatpush.msra.mxu0 %v229
        %772 = vmatpush.msra.mxu0 %v225
        %773 = vmatpush.msra.mxu0 %v221
        %774 = vmatpush.msra.mxu0 %v217
        %775 = vmatpush.msra.mxu0 %v213
        %776 = vmatpush.msra.mxu0 %v209
        %777 = vmatpush.msra.mxu0 %v205
        %778 = vmatmul.f32.gmra.mxu0 %v754
        %v779 = vpop.f32.mrf.mxu0
        %v780 = vadd.f32 0.0, %v779
        %781 = vdwg.mxu0
        %782 = vmatpush.msra.mxu0 %v266
        %783 = vmatpush.msra.mxu0 %v262
        %784 = vmatpush.msra.mxu0 %v258
        %785 = vmatpush.msra.mxu0 %v254
        %786 = vmatpush.msra.mxu0 %v250
        %787 = vmatpush.msra.mxu0 %v246
        %788 = vmatpush.msra.mxu0 %v242
        %789 = vmatpush.msra.mxu0 %v238
        %790 = vmatpush.msra.mxu0 %v234
        %791 = vmatpush.msra.mxu0 %v230
        %792 = vmatpush.msra.mxu0 %v226
        %793 = vmatpush.msra.mxu0 %v222
        %794 = vmatpush.msra.mxu0 %v218
        %795 = vmatpush.msra.mxu0 %v214
        %796 = vmatpush.msra.mxu0 %v210
        %797 = vmatpush.msra.mxu0 %v206
        %798 = vmatmul.f32.gmra.mxu0 %v754
        %v799 = vpop.f32.mrf.mxu0
        %v800 = vadd.f32 0.0, %v799
        %801 = vdwg.mxu0
        %802 = vmatpush.msra.mxu0 %v267
        %803 = vmatpush.msra.mxu0 %v263
        %804 = vmatpush.msra.mxu0 %v259
        %805 = vmatpush.msra.mxu0 %v255
        %806 = vmatpush.msra.mxu0 %v251
        %807 = vmatpush.msra.mxu0 %v247
        %808 = vmatpush.msra.mxu0 %v243
        %809 = vmatpush.msra.mxu0 %v239
        %810 = vmatpush.msra.mxu0 %v235
        %811 = vmatpush.msra.mxu0 %v231
        %812 = vmatpush.msra.mxu0 %v227
        %813 = vmatpush.msra.mxu0 %v223
        %814 = vmatpush.msra.mxu0 %v219
        %815 = vmatpush.msra.mxu0 %v215
        %816 = vmatpush.msra.mxu0 %v211
        %817 = vmatpush.msra.mxu0 %v207
        %818 = vmatmul.f32.gmra.mxu0 %v754
        %v819 = vpop.f32.mrf.mxu0
        %v820 = vadd.f32 0.0, %v819
        %821 = vdwg.mxu0
        %822 = vmatpush.msra.mxu0 %v268
        %823 = vmatpush.msra.mxu0 %v264
        %824 = vmatpush.msra.mxu0 %v260
        %825 = vmatpush.msra.mxu0 %v256
        %826 = vmatpush.msra.mxu0 %v252
        %827 = vmatpush.msra.mxu0 %v248
        %828 = vmatpush.msra.mxu0 %v244
        %829 = vmatpush.msra.mxu0 %v240
        %830 = vmatpush.msra.mxu0 %v236
        %831 = vmatpush.msra.mxu0 %v232
        %832 = vmatpush.msra.mxu0 %v228
        %833 = vmatpush.msra.mxu0 %v224
        %834 = vmatpush.msra.mxu0 %v220
        %835 = vmatpush.msra.mxu0 %v216
        %836 = vmatpush.msra.mxu0 %v212
        %837 = vmatpush.msra.mxu0 %v208
        %838 = vmatmul.f32.gmra.mxu0 %v754
        %v839 = vpop.f32.mrf.mxu0
        %v840 = vadd.f32 0.0, %v839
        %841 = vdwg.mxu0
        %v842 = vadd.f32 %v758, %v780
        %v843 = vadd.f32 %v759, %v800
        %v844 = vadd.f32 %v760, %v820
        %v845 = vadd.f32 %v761, %v840
        %v846 = vxor.u32 %v842, 2147483648
        %v847 = vmul.f32 %v846, 1.442695
        %v848 = vpow.pop %v847
        %v849 = vadd.f32 %v848, 1.0
        %v850 = vrcp.pop %v849
        %v851 = vmul.f32 %v849, %v850
        %v852 = vsub.f32 1.0, %v851
        %v853 = vmul.f32 %v850, %v852
        %v854 = vadd.f32 %v850, %v853
        %vm855 = vweird.f32 %v849
        %vm856 = vweird.f32 %v850
        %vm857 = vmor %vm855, %vm856
        %v858 = vsel %vm857, %v850, %v854
        %v859 = vand.u32 2147483647, %v849
        %vm860 = vcmp.eq.f32.partialorder %v859, 8.507059e+37
        %v861 = vand.u32 %v849, 2147483648
        %v862 = vor.u32 1.1754944e-38, %v861
        %v863 = vsel %vm860, %v862, %v858
        %v864 = vmul.f32 1.0, %v863
        %v865 = vxor.u32 %v843, 2147483648
        %v866 = vmul.f32 %v865, 1.442695
        %v867 = vpow.pop %v866
        %v868 = vadd.f32 %v867, 1.0
        %v869 = vrcp.pop %v868
        %v870 = vmul.f32 %v868, %v869
        %v871 = vsub.f32 1.0, %v870
        %v872 = vmul.f32 %v869, %v871
        %v873 = vadd.f32 %v869, %v872
        %vm874 = vweird.f32 %v868
        %vm875 = vweird.f32 %v869
        %vm876 = vmor %vm874, %vm875
        %v877 = vsel %vm876, %v869, %v873
        %v878 = vand.u32 2147483647, %v868
        %vm879 = vcmp.eq.f32.partialorder %v878, 8.507059e+37
        %v880 = vand.u32 %v868, 2147483648
        %v881 = vor.u32 1.1754944e-38, %v880
        %v882 = vsel %vm879, %v881, %v877
        %v883 = vmul.f32 1.0, %v882
        %v884 = vtanh.pop %v844
        %v885 = vxor.u32 %v845, 2147483648
        %v886 = vmul.f32 %v885, 1.442695
        %v887 = vpow.pop %v886
        %v888 = vadd.f32 %v887, 1.0
        %v889 = vrcp.pop %v888
        %v890 = vmul.f32 %v888, %v889
        %v891 = vsub.f32 1.0, %v890
        %v892 = vmul.f32 %v889, %v891
        %v893 = vadd.f32 %v889, %v892
        %vm894 = vweird.f32 %v888
        %vm895 = vweird.f32 %v889
        %vm896 = vmor %vm894, %vm895
        %v897 = vsel %vm896, %v889, %v893
        %v898 = vand.u32 2147483647, %v888
        %vm899 = vcmp.eq.f32.partialorder %v898, 8.507059e+37
        %v900 = vand.u32 %v888, 2147483648
        %v901 = vor.u32 1.1754944e-38, %v900
        %v902 = vsel %vm899, %v901, %v897
        %v903 = vmul.f32 1.0, %v902
        %v904 = vmul.f32 %v883, %v755
        %v905 = vmul.f32 %v864, %v884
        %v906 = vadd.f32 %v904, %v905
        %v907 = vtanh.pop %v906
        %v908 = vmul.f32 %v903, %v907
        %v909 = vstv %s756
        %vm910 = vcmp.lt.s32.totalorder %v909, %v204
        %v911 = vsel %vm910, 1, 0
        %912 = vset.pattern.permute.xlu0 0
        %913 = vperm.xlu0 %912, %v911
        %v914 = vpop.permute.xlu0 %913
        %vm915 = vcmp.eq.s32.totalorder %v914, 1
        %v916 = vsel %vm915, %v908, %v754
        %v917 = vsel %vm915, %v906, %v755
        %918 = vst [vmem:[#allocation2] sm:$0xff] %v916
        %919 = vst [vmem:[#allocation3] sm:$0xff] %v917
        %p920 = scmp.eq.s32.totalorder %s19, 1
        // Predicated region
        $region45: #{tpu_custom_call.1} parent=31 // pred_check
          %p921 = pneg %p920
        $region46: #{tpu_custom_call.1} parent=31 // pred_check_branch
          %923 = sbr.rel (%p921) target = $region48
        $region47: #{tpu_custom_call.1} parent=31 // pred_region
          %924 = vst [vmem:[#allocation9] sm:$0xff] %v916
        $region48: #{tpu_custom_call.1} parent=31 // pred_fallthru
          _
        // Predicated region
        $region49: #{tpu_custom_call.1} parent=31 // pred_check
          %p925 = pneg %p100
        $region50: #{tpu_custom_call.1} parent=31 // pred_check_branch
          %927 = sbr.rel (%p925) target = $region52
        $region51: #{tpu_custom_call.1} parent=31 // pred_region
          %929 = vsyncadd [#allocation6], 0
          %s931 = sshll.u32 [#allocation9], 4
          %s932 = int_to_ptr.vmem [resolvable:$true] %s931
          %s933 = sshll.u32 %s3, 4
          %s934 = int_to_ptr.hbm [resolvable:$true] %s933
          %936 = dma.vmem_to_hbm [thread:$0]  %s932, 128, %s934, [#allocation6]
        $region52: #{tpu_custom_call.1} parent=31 // pred_fallthru
          _
        // Predicated region
        $region53: #{tpu_custom_call.1} parent=31 // pred_check
          %p937 = pneg %p100
        $region54: #{tpu_custom_call.1} parent=31 // pred_check_branch
          %939 = sbr.rel (%p937) target = $region56
        $region55: #{tpu_custom_call.1} parent=31 // pred_region
          %941 = dma.done [#allocation6], 128
        $region56: #{tpu_custom_call.1} parent=31 // pred_fallthru
          _
      $region32: #{tpu_custom_call.1} parent=5 // pred_fallthru
        _
      %p942 = scmp.le.s32.totalorder 2, %s14
      // Predicated region
      $region57: #{tpu_custom_call.1} parent=5 // pred_check
        %p943 = pneg %p942
      $region58: #{tpu_custom_call.1} parent=5 // pred_check_branch
        %945 = sbr.rel (%p943) target = $region60
      $region59: #{tpu_custom_call.1} parent=5 // pred_region
        %s946 = ssub.s32 %s14, 2
      $region60: #{tpu_custom_call.1} parent=5 // pred_fallthru
        _
    $region6: #{tpu_custom_call.1} parent=1 // loop_footer
      %s18 = sadd.s32 1, %s14
    $region7: #{tpu_custom_call.1} parent=1 // loop_footer_branch
      %13 = sbr.rel target = $region3
    $region8: #{tpu_custom_call.1} parent=1 // loop_exit
      _
    %947 = vsyncpa [#allocation5], 1
    %s948 = scalar_lea.sflag [#allocation5], 1
    %949 = vsyncpa %s948, 1
    %950 = vsyncpa [#allocation8], 1
    %951 = vsyncpa [#allocation6], 1
    %s952 = scalar_lea.sflag [#allocation6], 1
    %953 = vsyncpa %s952, 1

</llo_original>
